<compile_context>
chip_gen: v6e
topology: v6e:2x2x1
jax: 0.10.0
libtpu: 0.0.40
codegen_flags: <defaults>
</compile_context>

<pallas_src>
import functools

import jax
import jax.numpy as jnp
from jax.experimental import pallas as pl
from jax.experimental.pallas import tpu as pltpu


# ----------------------------------------------------------------------------
# Kernels (elementwise on one (block_rows, lanes) tile)
# ----------------------------------------------------------------------------
def _lif_kernel_carry(beta, threshold, x_ref, mem_ref, spike_ref, mem_out_ref):
    """LIF update with a carried membrane potential (math in f32 in-register)."""
    mem_new = beta * mem_ref[...].astype(jnp.float32) + x_ref[...].astype(jnp.float32)
    cond = mem_new >= threshold                      # single compare, reused
    spike_ref[...] = cond.astype(spike_ref.dtype)
    mem_out_ref[...] = jnp.where(cond, mem_new - threshold, mem_new).astype(mem_out_ref.dtype)


def _lif_kernel_fresh(beta, threshold, reset_value, x_ref, spike_ref, mem_out_ref):
    """LIF update when mem=None: membrane starts at reset_value (compile-time const)."""
    mem_new = x_ref[...].astype(jnp.float32) + (beta * reset_value)   # constant folded
    cond = mem_new >= threshold
    spike_ref[...] = cond.astype(spike_ref.dtype)
    mem_out_ref[...] = jnp.where(cond, mem_new - threshold, mem_new).astype(mem_out_ref.dtype)


# ----------------------------------------------------------------------------
# Generation-aware tiling plan
# ----------------------------------------------------------------------------
_ALIGN = 32                         # sublane multiple valid for f32 / bf16 / int8 blocks
_SINGLE_BLOCK_MAX_BYTES = 1 << 20   # arrays <= 1 MiB (f32): one full-extent block


@functools.lru_cache(maxsize=1)
def _hw_block_config():
    """Return (target_block_bytes per f32 array, vmem_limit_bytes) for this chip."""
    try:
        vmem_cap = int(pltpu.get_tpu_info().vmem_capacity_bytes)
    except Exception:
        vmem_cap = 0
    if vmem_cap <= 0:
        # Unknown hardware: blocks that fit every default scoped-VMEM limit
        # (v5e's is only 16 MiB); leave the limit untouched.
        return (1 << 20), None
    if vmem_cap <= (96 << 20):
        # v7x-class core (64 MiB VMEM, ~3.2 TB/s HBM): larger blocks amortize
        # the fixed per-step cost; raise the scoped limit but stay under physical.
        return (4 << 20), min(48 << 20, (vmem_cap * 3) // 4)
    # v5e / v6e: 128 MiB physical VMEM (16 / 32 MiB default scoped limits).
    return (2 << 20), (64 << 20)


def _choose_lanes(total):
    """Pick a lane width (and wrapper-side pad) for a flat element count."""
    for cand in (1024, 512, 256, 128):
        if total % cand == 0:
            return cand, 0
    # Ragged total: find a divisor that still fills >=50% of the 128-wide lane
    # groups so the kernel sees the exact element count (no pad/slice passes).
    d = min(total, 2048)
    while d >= 64:
        if total % d == 0 and d >= 0.5 * (pl.cdiv(d, 128) * 128):
            return d, 0
        d -= 1
    # Pathological (prime / tiny) sizes: pad the flat array to 128 lanes.
    rows = pl.cdiv(total, 128)
    return 128, rows * 128 - total


def _plan_block_rows(rows, lanes, target_block_bytes, bytes_per_elem_all, vmem_limit_bytes):
    """Rows per block: big blocks (bytes-targeted), >=4 grid steps for large arrays."""
    lanes_vmem = pl.cdiv(lanes, 128) * 128
    if rows < 2 * _ALIGN or rows * lanes * 4 <= _SINGLE_BLOCK_MAX_BYTES:
        return rows                                   # single full-extent block
    target_rows = max(_ALIGN, (target_block_bytes // (4 * lanes_vmem)) // _ALIGN * _ALIGN)
    cap_rows = max(_ALIGN, (rows // 4) // _ALIGN * _ALIGN)   # keep >= ~4 grid steps
    block_rows = min(target_rows, cap_rows)
    # Defensive clamp: double-buffered blocks of every in/out array must fit VMEM.
    budget = ((vmem_limit_bytes or (16 << 20)) * 3) // 4
    while block_rows > _ALIGN and 2 * block_rows * lanes_vmem * bytes_per_elem_all > budget:
        block_rows = max(_ALIGN, (block_rows // 2) // _ALIGN * _ALIGN)
    return block_rows


# ----------------------------------------------------------------------------
# Public wrapper
# ----------------------------------------------------------------------------
def lif_neuron(input_current, mem=None, *, beta=0.9, threshold=1.0, reset_value=0.0,
               spike_dtype=jnp.float32, target_block_bytes=None, vmem_limit_bytes=None):
    """Pallas TPU implementation of LIFNeuron.forward.

    input_current: float array of any shape (e.g. NCHW), f32 or bf16.
    mem: optional same-shape membrane potential; defaults to reset_value.
    spike_dtype: dtype of the spike output (float32 matches PyTorch; int8/bf16
      cut HBM write traffic for bandwidth-bound pipelines).
    Returns (spike, mem); mem keeps the promoted input dtype.
    """
    x = jnp.asarray(input_current)
    if not jnp.issubdtype(x.dtype, jnp.floating):
        x = x.astype(jnp.float32)
    orig_shape = x.shape
    total = x.size
    spike_dtype = jnp.dtype(spike_dtype)

    m = None
    if mem is not None:
        m = jnp.asarray(mem)
        if not jnp.issubdtype(m.dtype, jnp.floating):
            m = m.astype(jnp.float32)
        mem_out_dtype = jnp.promote_types(x.dtype, m.dtype)
    else:
        mem_out_dtype = x.dtype

    if total == 0:
        return jnp.zeros(orig_shape, spike_dtype), jnp.zeros(orig_shape, mem_out_dtype)

    hw_target, hw_limit = _hw_block_config()
    if target_block_bytes is None:
        target_block_bytes = hw_target
    if vmem_limit_bytes is None:
        vmem_limit_bytes = hw_limit

    lanes, pad = _choose_lanes(total)
    rows = (total + pad) // lanes

    isz = lambda dt: jnp.dtype(dt).itemsize
    bytes_per_elem_all = (isz(x.dtype) + (isz(m.dtype) if m is not None else 0)
                          + isz(spike_dtype) + isz(mem_out_dtype))

    block_rows = _plan_block_rows(rows, lanes, target_block_bytes,
                                  bytes_per_elem_all, vmem_limit_bytes)
    grid = (pl.cdiv(rows, block_rows),)

    def to_slab(a):
        flat = a.reshape(-1)
        if pad:   # rare fallback path only (prime / tiny element counts)
            flat = jnp.pad(flat, (0, pad))
        return flat.reshape(rows, lanes)

    def from_slab(a):
        flat = a.reshape(-1)
        if pad:
            flat = flat[:total]
        return flat.reshape(orig_shape)

    def make_spec():
        return pl.BlockSpec((block_rows, lanes), lambda i: (i, 0))

    out_shape = (jax.ShapeDtypeStruct((rows, lanes), spike_dtype),
                 jax.ShapeDtypeStruct((rows, lanes), mem_out_dtype))
    out_specs = (make_spec(), make_spec())
    cparams = pltpu.CompilerParams(dimension_semantics=("parallel",),
                                   vmem_limit_bytes=vmem_limit_bytes)

    x2 = to_slab(x)
    beta = float(beta)
    threshold = float(threshold)
    reset_value = float(reset_value)
    flops = 4 * total

    if m is None:
        # Specialized path: no full-size reset-membrane array streamed from HBM.
        cost = pl.CostEstimate(
            flops=flops, transcendentals=0,
            bytes_accessed=total * (isz(x.dtype) + isz(spike_dtype) + isz(mem_out_dtype)))
        spike2, mem2 = pl.pallas_call(
            functools.partial(_lif_kernel_fresh, beta, threshold, reset_value),
            out_shape=out_shape,
            grid_spec=pltpu.PrefetchScalarGridSpec(
                num_scalar_prefetch=0, grid=grid,
                in_specs=[make_spec()], out_specs=out_specs),
            compiler_params=cparams,
            cost_estimate=cost,
        )(x2)
    else:
        m2 = to_slab(m)
        cost = pl.CostEstimate(flops=flops, transcendentals=0,
                               bytes_accessed=total * bytes_per_elem_all)
        # In-place membrane update: alias mem input -> mem output when dtypes match.
        aliases = {1: 1} if m2.dtype == mem_out_dtype else {}
        spike2, mem2 = pl.pallas_call(
            functools.partial(_lif_kernel_carry, beta, threshold),
            out_shape=out_shape,
            grid_spec=pltpu.PrefetchScalarGridSpec(
                num_scalar_prefetch=0, grid=grid,
                in_specs=[make_spec(), make_spec()], out_specs=out_specs),
            compiler_params=cparams,
            cost_estimate=cost,
            input_output_aliases=aliases,
        )(x2, m2)

    return from_slab(spike2), from_slab(mem2)


# ----------------------------------------------------------------------------
# Pure-JAX reference (mirrors the kernel: compute in f32, cast outputs back)
# ----------------------------------------------------------------------------
def lif_reference(input_current, mem=None, *, beta=0.9, threshold=1.0,
                  reset_value=0.0, spike_dtype=jnp.float32):
    x = jnp.asarray(input_current)
    if not jnp.issubdtype(x.dtype, jnp.floating):
        x = x.astype(jnp.float32)
    if mem is None:
        m = jnp.full(x.shape, reset_value, dtype=x.dtype)
    else:
        m = jnp.asarray(mem)
    out_dtype = jnp.promote_types(x.dtype, m.dtype)
    mem_new = beta * m.astype(jnp.float32) + x.astype(jnp.float32)
    cond = mem_new >= threshold
    spike = cond.astype(spike_dtype)
    mem_new = jnp.where(cond, mem_new - threshold, mem_new)
    return spike, mem_new.astype(out_dtype)


if __name__ == "__main__":
    key = jax.random.PRNGKey(0)
    k1, k2, k3, k4 = jax.random.split(key, 4)

    # Small NCHW-shaped input current (e.g. conv output at one timestep).
    B, C, H, W = 2, 4, 16, 16
    x = jax.random.normal(k1, (B, C, H, W), dtype=jnp.float32) * 1.5
    mem_prev = jax.random.uniform(k2, (B, C, H, W), dtype=jnp.float32)

    # Case 1: mem=None (fresh membrane at reset_value) -> specialized kernel.
    s0, m0 = lif_neuron(x)
    jax.block_until_ready((s0, m0))
    rs0, rm0 = lif_reference(x)
    assert s0.shape == (B, C, H, W) and m0.shape == (B, C, H, W)
    assert s0.dtype == jnp.float32
    assert jnp.allclose(s0, rs0) and jnp.allclose(m0, rm0, atol=1e-6)

    # Case 2: carried membrane state.
    s1, m1 = lif_neuron(x, mem_prev)
    jax.block_until_ready((s1, m1))
    rs1, rm1 = lif_reference(x, mem_prev)
    assert jnp.allclose(s1, rs1) and jnp.allclose(m1, rm1, atol=1e-6)

    # Case 3: 2 MiB activation -> multi-block grid (>=4 steps), mem aliased in-place.
    x3 = jax.random.normal(k3, (16, 8, 64, 64), dtype=jnp.float32) * 1.5
    m3 = jax.random.uniform(k4, (16, 8, 64, 64), dtype=jnp.float32)
    s3, m3o = lif_neuron(x3, m3)
    jax.block_until_ready((s3, m3o))
    rs3, rm3 = lif_reference(x3, m3)
    assert jnp.allclose(s3, rs3) and jnp.allclose(m3o, rm3, atol=1e-6)

    # Case 4: ragged element count (3*5*7*11=1155, not 128-divisible) handled via
    # divisor lanes (no wrapper pad/slice), with a narrow int8 spike output.
    x4 = jax.random.normal(k3, (3, 5, 7, 11), dtype=jnp.float32) * 1.5
    s4, m4 = lif_neuron(x4, spike_dtype=jnp.int8)
    jax.block_until_ready((s4, m4))
    rs4, rm4 = lif_reference(x4, spike_dtype=jnp.int8)
    assert s4.dtype == jnp.int8
    assert jnp.array_equal(s4, rs4) and jnp.allclose(m4, rm4, atol=1e-6)

    # Case 5: bf16 activations stream as bf16 (no wrapper upcast), f32 math in-register.
    xb = x.astype(jnp.bfloat16)
    mb = mem_prev.astype(jnp.bfloat16)
    sb, mbo = lif_neuron(xb, mb)
    jax.block_until_ready((sb, mbo))
    rsb, rmb = lif_reference(xb, mb)
    assert mbo.dtype == jnp.bfloat16 and sb.dtype == jnp.float32
    assert jnp.allclose(sb, rsb) and jnp.allclose(mbo.astype(jnp.float32),
                                                  rmb.astype(jnp.float32), atol=2e-2)

    print("KERNEL_OK")
</pallas_src>

<mosaic_0001>
module attributes {stable_mosaic.version = 11 : i64} {
  func.func @_lif_kernel_fresh(%arg0: i32, %arg1: memref<2x1024xf32, #tpu.memory_space<vmem>>, %arg2: memref<2x1024xf32, #tpu.memory_space<vmem>>, %arg3: memref<2x1024xf32, #tpu.memory_space<vmem>>) attributes {dimension_semantics = [#tpu.dimension_semantics<parallel>], iteration_bounds = array<i64: 1>, scalar_prefetch = 0 : i64, scratch_operands = 0 : i64, tpu.core_type = #tpu.core_type<tc>, window_params = [{transform_indices = @transform_0, window_bounds = array<i64: 2, 1024>}, {transform_indices = @transform_1, window_bounds = array<i64: 2, 1024>}, {transform_indices = @transform_2, window_bounds = array<i64: 2, 1024>}]} {
    %c0 = arith.constant 0 : index
    %c0_0 = arith.constant 0 : index
    %0 = vector.load %arg1[%c0, %c0_0] : memref<2x1024xf32, #tpu.memory_space<vmem>>, vector<2x1024xf32>
    %cst = arith.constant 0.000000e+00 : f32
    %1 = vector.broadcast %cst : f32 to vector<2x1024xf32>
    %2 = arith.addf %0, %1 : vector<2x1024xf32>
    %cst_1 = arith.constant 1.000000e+00 : f32
    %3 = vector.broadcast %cst_1 : f32 to vector<2x1024xf32>
    %4 = arith.cmpf oge, %2, %3 : vector<2x1024xf32>
    %5 = arith.extui %4 : vector<2x1024xi1> to vector<2x1024xi32>
    %6 = arith.sitofp %5 : vector<2x1024xi32> to vector<2x1024xf32>
    %c0_2 = arith.constant 0 : index
    %c0_3 = arith.constant 0 : index
    %7 = vector.load %arg2[%c0_2, %c0_3] : memref<2x1024xf32, #tpu.memory_space<vmem>>, vector<2x1024xf32>
    tpu.vector_store %arg2[%c0_2, %c0_3], %6 {strides = array<i32>} : memref<2x1024xf32, #tpu.memory_space<vmem>>, vector<2x1024xf32>,
    %cst_4 = arith.constant 1.000000e+00 : f32
    %8 = vector.broadcast %cst_4 : f32 to vector<2x1024xf32>
    %9 = arith.subf %2, %8 : vector<2x1024xf32>
    %10 = arith.select %4, %9, %2 : vector<2x1024xi1>, vector<2x1024xf32>
    %c0_5 = arith.constant 0 : index
    %c0_6 = arith.constant 0 : index
    %11 = vector.load %arg3[%c0_5, %c0_6] : memref<2x1024xf32, #tpu.memory_space<vmem>>, vector<2x1024xf32>
    tpu.vector_store %arg3[%c0_5, %c0_6], %10 {strides = array<i32>} : memref<2x1024xf32, #tpu.memory_space<vmem>>, vector<2x1024xf32>,
    return
  }
  func.func @transform_0(%arg0: i32) -> (i32, i32) {
    %c0_i32 = arith.constant 0 : i32
    %c0_i32_0 = arith.constant 0 : i32
    return %arg0, %c0_i32 : i32, i32
  }
  func.func @transform_1(%arg0: i32) -> (i32, i32) {
    %c0_i32 = arith.constant 0 : i32
    %c0_i32_0 = arith.constant 0 : i32
    return %arg0, %c0_i32 : i32, i32
  }
  func.func @transform_2(%arg0: i32) -> (i32, i32) {
    %c0_i32 = arith.constant 0 : i32
    %c0_i32_0 = arith.constant 0 : i32
    return %arg0, %c0_i32 : i32, i32
  }
}

</mosaic_0001>

<llo_original>
// kernel: tpu_custom_call.1
$region0: #{tpu_custom_call.1}
  #allocation0 [shape = 'u32[]', space=smem, size = 0x4, offset = 0x4, fixed_abs, tag = 'smem constant byte address 0x4 - core index']
  #allocation1 [shape = 'u32[144,128]{1,0:T(1,128)}', space=vmem, size = 0x12000, scoped, tag = 'internal scratch']
  %s0 = inlined_call_operand.hbm [shape: f32[2,1024], index: 0, kind: input, shape index: {}]
  %s1 = inlined_call_operand.hbm [shape: f32[2,1024], index: 1, kind: output, shape index: {0}]
  %s2 = inlined_call_operand.hbm [shape: f32[2,1024], index: 2, kind: output, shape index: {1}]
  %3 = xla_tuple %s1, %s2
  %s4 = sld [smem:[#allocation0]]
  $region26: #{tpu_custom_call.1} parent=0
    _
  %s6 = ssub.s32 1, %s4
  %s7 = scalar_select 0, %s6, %s4
  $region1: #{tpu_custom_call.1} parent=0
    #allocation2 [shape = 'u8[8192]{0}', space=vmem, size = 0x2000, scoped, tag = 'input window, operand 0, single buffered']
    #allocation3 [shape = 's32[1]{0}', space=sflag, size = 0x4, scoped, tag = 'scoped memory for tpu_custom_call.1']
    #allocation4 [shape = 's32[1]{0}', space=sflag, size = 0x4, scoped, tag = 'scoped memory for tpu_custom_call.1']
    #allocation5 [shape = 'u8[8192]{0}', space=vmem, size = 0x2000, scoped, tag = 'output window, operand 0, single buffered']
    #allocation6 [shape = 'u8[8192]{0}', space=vmem, size = 0x2000, scoped, tag = 'output window, operand 1, single buffered']
    #allocation7 [shape = 's32[1]{0}', space=sflag, size = 0x4, scoped, tag = 'scoped memory for tpu_custom_call.1']
    %8 = vsyncpa [#allocation3], 0
    %9 = vsyncpa [#allocation4], 0
    %10 = vsyncpa [#allocation7], 0
    // Predicated region
    $region2: #{tpu_custom_call.1} parent=1 // pred_check
      _
    $region3: #{tpu_custom_call.1} parent=1 // pred_check_branch
      %12 = sbr.rel (0) target = $region5
    $region4: #{tpu_custom_call.1} parent=1 // pred_region
      %s14 = ssub.s32 256, 256
      %15 = vsyncadd [#allocation3], %s14
      %s17 = sshll.u32 [#allocation2], 4
      %s18 = int_to_ptr.vmem [resolvable:$true] %s17
      %20 = dma.hbm_to_vmem [thread:$0]  %s0, 256, %s18, [#allocation3]
    $region5: #{tpu_custom_call.1} parent=1 // pred_fallthru
      _
    // Predicated region
    $region6: #{tpu_custom_call.1} parent=1 // pred_check
      _
    $region7: #{tpu_custom_call.1} parent=1 // pred_check_branch
      %22 = sbr.rel (0) target = $region9
    $region8: #{tpu_custom_call.1} parent=1 // pred_region
      %23 = dma.done [#allocation3], 256
    $region9: #{tpu_custom_call.1} parent=1 // pred_fallthru
      _
    %v24 = vld [vmem:[#allocation2] sm:$0xff]
    %v25 = vld [vmem:[#allocation2 + $0x8] sm:$0xff]
    %v26 = vadd.f32 %v24, 0.0
    %v27 = vadd.f32 %v25, 0.0
    %vm28 = vcmp.ge.f32.partialorder %v26, 1.0
    %vm29 = vcmp.ge.f32.partialorder %v27, 1.0
    %v30 = vsel %vm28, 1, 0
    %v31 = vsel %vm29, 1, 0
    %v32 = vcvt.s32.f32 %v30
    %v33 = vcvt.s32.f32 %v31
    %34 = vst [vmem:[#allocation5] sm:$0xff] %v32
    %35 = vst [vmem:[#allocation5 + $0x8] sm:$0xff] %v33
    %v36 = vsub.f32 %v26, 1.0
    %v37 = vsub.f32 %v27, 1.0
    %v38 = vsel %vm28, %v36, %v26
    %v39 = vsel %vm29, %v37, %v27
    %40 = vst [vmem:[#allocation6] sm:$0xff] %v38
    %41 = vst [vmem:[#allocation6 + $0x8] sm:$0xff] %v39
    // Predicated region
    $region10: #{tpu_custom_call.1} parent=1 // pred_check
      _
    $region11: #{tpu_custom_call.1} parent=1 // pred_check_branch
      %43 = sbr.rel (0) target = $region13
    $region12: #{tpu_custom_call.1} parent=1 // pred_region
      %s45 = ssub.s32 256, 256
      %46 = vsyncadd [#allocation4], %s45
      %s48 = sshll.u32 [#allocation5], 4
      %s49 = int_to_ptr.vmem [resolvable:$true] %s48
      %51 = dma.vmem_to_hbm [thread:$0]  %s49, 256, %s1, [#allocation4]
    $region13: #{tpu_custom_call.1} parent=1 // pred_fallthru
      _
    // Predicated region
    $region14: #{tpu_custom_call.1} parent=1 // pred_check
      _
    $region15: #{tpu_custom_call.1} parent=1 // pred_check_branch
      %53 = sbr.rel (0) target = $region17
    $region16: #{tpu_custom_call.1} parent=1 // pred_region
      %s55 = ssub.s32 256, 256
      %56 = vsyncadd [#allocation7], %s55
      %s58 = sshll.u32 [#allocation6], 4
      %s59 = int_to_ptr.vmem [resolvable:$true] %s58
      %61 = dma.vmem_to_hbm [thread:$0]  %s59, 256, %s2, [#allocation7]
    $region17: #{tpu_custom_call.1} parent=1 // pred_fallthru
      _
    // Predicated region
    $region18: #{tpu_custom_call.1} parent=1 // pred_check
      _
    $region19: #{tpu_custom_call.1} parent=1 // pred_check_branch
      %63 = sbr.rel (0) target = $region21
    $region20: #{tpu_custom_call.1} parent=1 // pred_region
      %64 = dma.done [#allocation4], 256
    $region21: #{tpu_custom_call.1} parent=1 // pred_fallthru
      _
    // Predicated region
    $region22: #{tpu_custom_call.1} parent=1 // pred_check
      _
    $region23: #{tpu_custom_call.1} parent=1 // pred_check_branch
      %66 = sbr.rel (0) target = $region25
    $region24: #{tpu_custom_call.1} parent=1 // pred_region
      %67 = dma.done [#allocation7], 256
    $region25: #{tpu_custom_call.1} parent=1 // pred_fallthru
      _
    %68 = vsyncpa [#allocation3], 1
    %69 = vsyncpa [#allocation4], 1
    %70 = vsyncpa [#allocation7], 1

</llo_original>
